<compile_context>
chip_gen: v7x
topology: tpu7x:2x2x1
jax: 0.10.0
libtpu: 0.0.40
codegen_flags: <defaults>
</compile_context>

<pallas_src>
import jax
import jax.numpy as jnp
from jax.experimental import pallas as pl
from jax.experimental.pallas import tpu as pltpu


def encoder_kernel(theta_ref, ab_ref, w1_ref, w2_ref, out_ref):
    feat = ab_ref.shape[-1] // 2
    ab = ab_ref[...]                                            # (B, 2F) = [a | b]

    # --- CVLinear #1: one fused MXU matmul -> [real | imag] ---
    z1 = jnp.dot(ab, w1_ref[...], preferred_element_type=jnp.float32)   # (B, 2F)
    re = z1[:, :feat]
    im = z1[:, feat:]

    # --- CVSoftThreshold: x * max(1 - theta * rsqrt(|x|^2), 0) ---
    inv = jax.lax.rsqrt(re * re + im * im)                      # EUP rsqrt, no divides
    scale = jnp.maximum(1.0 - theta_ref[0] * inv, 0.0)          # (B, F)
    z1s = jnp.concatenate([re * scale, im * scale], axis=-1)    # (B, 2F)

    # --- CVLinear #2: second fused MXU matmul ---
    out_ref[...] = jnp.dot(z1s, w2_ref[...], preferred_element_type=jnp.float32)


def encoder_forward(x, params):
    """x: complex64 (B, F).  Returns complex64 (B, F), matching Encoder.forward."""
    B, F = x.shape
    # Single lane-dense input slab; the reshape/concat happens once in XLA, and the
    # kernel reads/writes one (B, 2F) block (no per-part slicing / output stacking).
    ab = jnp.concatenate([jnp.real(x), jnp.imag(x)], axis=-1).astype(jnp.float32)

    vmem = pl.BlockSpec(memory_space=pltpu.MemorySpace.VMEM)
    smem = pl.BlockSpec(memory_space=pltpu.MemorySpace.SMEM)

    out = pl.pallas_call(
        encoder_kernel,
        out_shape=jax.ShapeDtypeStruct((B, 2 * F), jnp.float32),
        in_specs=[smem, vmem, vmem, vmem],
        out_specs=vmem,
    )(params["theta"], ab, params["w1_big"], params["w2_big"])

    return jax.lax.complex(out[:, :F], out[:, F:])


def _block_weight(wr, wi):
    """(out,in) real/imag nn.Linear weights -> (2F, 2F) fused block weight."""
    return jnp.block([[wr.T, wi.T],
                      [-wi.T, wr.T]]).astype(jnp.float32)


def make_params(key, in_features, theta=0.3):
    """Deterministic synthetic params matching the module's __init__ shapes."""
    F = in_features
    k1, k2, k3, k4 = jax.random.split(key, 4)
    bound = 1.0 / jnp.sqrt(F)
    # nn.Linear weight shape is (out, in), bias=False in CVLinear.
    w1r = jax.random.uniform(k1, (F, F), jnp.float32, -bound, bound)
    w1i = jax.random.uniform(k2, (F, F), jnp.float32, -bound, bound)
    w2r = jax.random.uniform(k3, (F, F), jnp.float32, -bound, bound)
    w2i = jax.random.uniform(k4, (F, F), jnp.float32, -bound, bound)
    return {
        # raw weights (for the reference)
        "w1r": w1r, "w1i": w1i, "w2r": w2r, "w2i": w2i,
        # fused block weights (for the kernel)
        "w1_big": _block_weight(w1r, w1i),
        "w2_big": _block_weight(w2r, w2i),
        # CVSoftThreshold theta (nn.Parameter, default 0; nonzero here so the
        # thresholding branch is actually exercised in the test)
        "theta": jnp.full((1,), theta, jnp.float32),
    }


def encoder_ref(x_real, x_imag, p):
    """Pure-JAX reference mirroring the PyTorch forward exactly."""

    def cvlinear(r, im, wr, wi):
        AC = r @ wr.T
        BD = im @ wi.T
        AD = r @ wi.T
        BC = im @ wr.T
        return AC - BD, AD + BC

    def soft(r, im, theta):
        absx = jnp.sqrt(r * r + im * im)
        B = jnp.maximum(absx - theta, 0.0)
        return (r / absx) * B, (im / absx) * B

    r, im = cvlinear(x_real, x_imag, p["w1r"], p["w1i"])
    r, im = soft(r, im, p["theta"][0])
    r, im = cvlinear(r, im, p["w2r"], p["w2i"])
    return r, im


if __name__ == "__main__":
    B, Fdim = 8, 32   # in_features = 32; complex input of shape (B, F)
    key = jax.random.PRNGKey(0)
    kr, ki, kp = jax.random.split(key, 3)
    x_real = jax.random.normal(kr, (B, Fdim), jnp.float32)
    x_imag = jax.random.normal(ki, (B, Fdim), jnp.float32)
    x = jax.lax.complex(x_real, x_imag)
    params = make_params(kp, Fdim, theta=0.3)

    out = jax.block_until_ready(encoder_forward(x, params))
    ref_r, ref_i = encoder_ref(x_real, x_imag, params)

    assert out.shape == (B, Fdim)
    assert jnp.allclose(jnp.real(out), ref_r, rtol=2e-3, atol=2e-3), "real part mismatch"
    assert jnp.allclose(jnp.imag(out), ref_i, rtol=2e-3, atol=2e-3), "imag part mismatch"
    print("KERNEL_OK")
</pallas_src>

<mosaic_0001>
module attributes {stable_mosaic.version = 11 : i64} {
  func.func @encoder_kernel(%arg0: memref<1xf32, #tpu.memory_space<smem>>, %arg1: memref<8x64xf32, #tpu.memory_space<vmem>>, %arg2: memref<64x64xf32, #tpu.memory_space<vmem>>, %arg3: memref<64x64xf32, #tpu.memory_space<vmem>>, %arg4: memref<8x64xf32, #tpu.memory_space<vmem>>) attributes {dimension_semantics = [], scalar_prefetch = 0 : i64, scratch_operands = 0 : i64, tpu.core_type = #tpu.core_type<tc>} {
    %c0 = arith.constant 0 : index
    %c0_0 = arith.constant 0 : index
    %0 = vector.load %arg1[%c0, %c0_0] : memref<8x64xf32, #tpu.memory_space<vmem>>, vector<8x64xf32>
    %c0_1 = arith.constant 0 : index
    %c0_2 = arith.constant 0 : index
    %1 = vector.load %arg2[%c0_1, %c0_2] : memref<64x64xf32, #tpu.memory_space<vmem>>, vector<64x64xf32>
    %cst = arith.constant dense<0.000000e+00> : vector<8x64xf32>
    %2 = tpu.matmul %0, %1, %cst {dimension_numbers = #tpu.dot_dimension_numbers<[1], [0], [0], [1], [0, 0, 1, 1], [], []>} : vector<8x64xf32>, vector<64x64xf32>, vector<8x64xf32> -> vector<8x64xf32>
    %3 = vector.extract_strided_slice %2 {offsets = [0, 0], sizes = [8, 32], strides = [1, 1]} : vector<8x64xf32> to vector<8x32xf32>
    %4 = vector.extract_strided_slice %2 {offsets = [0, 32], sizes = [8, 32], strides = [1, 1]} : vector<8x64xf32> to vector<8x32xf32>
    %5 = arith.mulf %3, %3 : vector<8x32xf32>
    %6 = arith.mulf %4, %4 : vector<8x32xf32>
    %7 = arith.addf %5, %6 : vector<8x32xf32>
    %8 = math.rsqrt %7 : vector<8x32xf32>
    %c0_3 = arith.constant 0 : index
    %9 = memref.load %arg0[%c0_3] : memref<1xf32, #tpu.memory_space<smem>>
    %10 = vector.broadcast %9 : f32 to vector<8x32xf32>
    %11 = arith.mulf %10, %8 : vector<8x32xf32>
    %cst_4 = arith.constant 1.000000e+00 : f32
    %12 = vector.broadcast %cst_4 : f32 to vector<8x32xf32>
    %13 = arith.subf %12, %11 : vector<8x32xf32>
    %cst_5 = arith.constant 0.000000e+00 : f32
    %14 = vector.broadcast %cst_5 : f32 to vector<8x32xf32>
    %15 = arith.maximumf %13, %14 : vector<8x32xf32>
    %16 = arith.mulf %3, %15 : vector<8x32xf32>
    %17 = arith.mulf %4, %15 : vector<8x32xf32>
    %18 = tpu.concatenate %16, %17 in 1 : vector<8x32xf32>, vector<8x32xf32> -> vector<8x64xf32>
    %c0_6 = arith.constant 0 : index
    %c0_7 = arith.constant 0 : index
    %19 = vector.load %arg3[%c0_6, %c0_7] : memref<64x64xf32, #tpu.memory_space<vmem>>, vector<64x64xf32>
    %cst_8 = arith.constant dense<0.000000e+00> : vector<8x64xf32>
    %20 = tpu.matmul %18, %19, %cst_8 {dimension_numbers = #tpu.dot_dimension_numbers<[1], [0], [0], [1], [0, 0, 1, 1], [], []>} : vector<8x64xf32>, vector<64x64xf32>, vector<8x64xf32> -> vector<8x64xf32>
    %c0_9 = arith.constant 0 : index
    %c0_10 = arith.constant 0 : index
    %21 = vector.load %arg4[%c0_9, %c0_10] : memref<8x64xf32, #tpu.memory_space<vmem>>, vector<8x64xf32>
    tpu.vector_store %arg4[%c0_9, %c0_10], %20 {strides = array<i32>} : memref<8x64xf32, #tpu.memory_space<vmem>>, vector<8x64xf32>,
    return
  }
}

</mosaic_0001>

<llo_original>
// kernel: tpu_custom_call.1
$region0: #{tpu_custom_call.1}
  #allocation0 [shape = 'u32[]', space=smem, size = 0x4, offset = 0x4, fixed_abs, tag = 'smem constant byte address 0x4 - core index']
  #allocation1 [shape = 'u32[144,128]{1,0:T(1,128)}', space=vmem, size = 0x12000, scoped, tag = 'internal scratch']
  #allocation2 [shape = 'f32[1]{0:T(128)S(6)}', space=smem, size = 0x200, scoped, tag = 'scoped memory for tpu_custom_call.1']
  %s0 = inlined_call_operand.<no memory space> [shape: f32[1], index: 0, kind: input, shape index: {}]
  %s1 = inlined_call_operand.hbm [shape: f32[8,64], index: 1, kind: input, shape index: {}]
  %s2 = inlined_call_operand.hbm [shape: f32[64,64], index: 2, kind: input, shape index: {}]
  %s3 = inlined_call_operand.hbm [shape: f32[64,64], index: 3, kind: input, shape index: {}]
  %s4 = inlined_call_operand.hbm [shape: f32[8,64], index: 4, kind: output, shape index: {}]
  %s5 = sld [smem:[#allocation0]]
  $region38: #{tpu_custom_call.1} parent=0
    _
  %s7 = ssub.s32 1, %s5
  %s8 = scalar_select 0, %s7, %s5
  %9 = sst [smem:[#allocation2]] %s0
  $region1: #{tpu_custom_call.1} parent=0
    #allocation3 [shape = 'u8[4096]{0}', space=vmem, size = 0x1000, scoped, tag = 'input window, operand 1, single buffered']
    #allocation4 [shape = 's32[1]{0}', space=sflag, size = 0x4, scoped, tag = 'scoped memory for tpu_custom_call.1']
    #allocation5 [shape = 's32[1]{0}', space=sflag, size = 0x4, scoped, tag = 'scoped memory for tpu_custom_call.1']
    #allocation6 [shape = 'u8[32768]{0}', space=vmem, size = 0x8000, scoped, tag = 'input window, operand 2, single buffered']
    #allocation7 [shape = 's32[1]{0}', space=sflag, size = 0x4, scoped, tag = 'scoped memory for tpu_custom_call.1']
    #allocation8 [shape = 'u8[32768]{0}', space=vmem, size = 0x8000, scoped, tag = 'input window, operand 3, single buffered']
    #allocation9 [shape = 'u8[4096]{0}', space=vmem, size = 0x1000, scoped, tag = 'output window, operand 0, single buffered']
    %10 = vsyncpa [#allocation4], 0
    %11 = vsyncpa [#allocation7], 0
    %12 = vsyncpa [#allocation5], 0
    // Predicated region
    $region2: #{tpu_custom_call.1} parent=1 // pred_check
      _
    $region3: #{tpu_custom_call.1} parent=1 // pred_check_branch
      %14 = sbr.rel (0) target = $region5
    $region4: #{tpu_custom_call.1} parent=1 // pred_region
      _
    $region5: #{tpu_custom_call.1} parent=1 // pred_fallthru
      _
    // Predicated region
    $region6: #{tpu_custom_call.1} parent=1 // pred_check
      _
    $region7: #{tpu_custom_call.1} parent=1 // pred_check_branch
      %16 = sbr.rel (0) target = $region9
    $region8: #{tpu_custom_call.1} parent=1 // pred_region
      %s18 = ssub.s32 128, 128
      %19 = vsyncadd [#allocation4], %s18
      %s21 = sshll.u32 [#allocation3], 4
      %s22 = int_to_ptr.vmem [resolvable:$true] %s21
      %24 = dma.hbm_to_vmem [thread:$0]  %s1, 128, %s22, [#allocation4]
    $region9: #{tpu_custom_call.1} parent=1 // pred_fallthru
      _
    // Predicated region
    $region10: #{tpu_custom_call.1} parent=1 // pred_check
      _
    $region11: #{tpu_custom_call.1} parent=1 // pred_check_branch
      %26 = sbr.rel (0) target = $region13
    $region12: #{tpu_custom_call.1} parent=1 // pred_region
      %s28 = ssub.s32 1024, 1024
      %29 = vsyncadd [#allocation7], %s28
      %s30 = sshll.u32 [#allocation6], 4
      %s31 = int_to_ptr.vmem [resolvable:$true] %s30
      %36 = dma.hbm_to_vmem [thread:$0]  %s2, 1024, %s31, [#allocation7], 128, 128, 8
    $region13: #{tpu_custom_call.1} parent=1 // pred_fallthru
      _
    // Predicated region
    $region14: #{tpu_custom_call.1} parent=1 // pred_check
      _
    $region15: #{tpu_custom_call.1} parent=1 // pred_check_branch
      %38 = sbr.rel (0) target = $region17
    $region16: #{tpu_custom_call.1} parent=1 // pred_region
      %s40 = ssub.s32 1024, 1024
      %41 = vsyncadd [#allocation7], %s40
      %s42 = sshll.u32 [#allocation8], 4
      %s43 = int_to_ptr.vmem [resolvable:$true] %s42
      %48 = dma.hbm_to_vmem [thread:$0]  %s3, 1024, %s43, [#allocation7], 128, 128, 8
    $region17: #{tpu_custom_call.1} parent=1 // pred_fallthru
      _
    // Predicated region
    $region18: #{tpu_custom_call.1} parent=1 // pred_check
      _
    $region19: #{tpu_custom_call.1} parent=1 // pred_check_branch
      %50 = sbr.rel (0) target = $region21
    $region20: #{tpu_custom_call.1} parent=1 // pred_region
      %51 = dma.done [#allocation4], 128
    $region21: #{tpu_custom_call.1} parent=1 // pred_fallthru
      _
    // Predicated region
    $region22: #{tpu_custom_call.1} parent=1 // pred_check
      _
    $region23: #{tpu_custom_call.1} parent=1 // pred_check_branch
      %53 = sbr.rel (0) target = $region25
    $region24: #{tpu_custom_call.1} parent=1 // pred_region
      %54 = dma.done [#allocation7], 1024
    $region25: #{tpu_custom_call.1} parent=1 // pred_fallthru
      _
    // Predicated region
    $region26: #{tpu_custom_call.1} parent=1 // pred_check
      _
    $region27: #{tpu_custom_call.1} parent=1 // pred_check_branch
      %56 = sbr.rel (0) target = $region29
    $region28: #{tpu_custom_call.1} parent=1 // pred_region
      %57 = dma.done [#allocation7], 1024
    $region29: #{tpu_custom_call.1} parent=1 // pred_fallthru
      _
    %v58 = vld [vmem:[#allocation3] sm:$0xff]
    %v59 = vld [vmem:[#allocation6] sm:$0xff]
    %v60 = vld [vmem:[#allocation6 + $0x8] sm:$0xff]
    %v61 = vld [vmem:[#allocation6 + $0x10] sm:$0xff]
    %v62 = vld [vmem:[#allocation6 + $0x18] sm:$0xff]
    %v63 = vld [vmem:[#allocation6 + $0x20] sm:$0xff]
    %v64 = vld [vmem:[#allocation6 + $0x28] sm:$0xff]
    %v65 = vld [vmem:[#allocation6 + $0x30] sm:$0xff]
    %v66 = vld [vmem:[#allocation6 + $0x38] sm:$0xff]
    %vm67 = vcmask 523264
    %v69 = vsel %vm67, %v58, 0
    %71 = vmatprep.subr.mxu0 0.0
    %72 = vmatpush1.msra.mxu0 %v59
    %73 = vmatprep.subr.mxu0 0.0
    %74 = vmatpush1.msra.mxu0 %v60
    %75 = vmatprep.subr.mxu0 0.0
    %76 = vmatpush1.msra.mxu0 %v61
    %77 = vmatprep.subr.mxu0 0.0
    %78 = vmatpush1.msra.mxu0 %v62
    %79 = vmatprep.subr.mxu0 0.0
    %80 = vmatpush1.msra.mxu0 %v63
    %81 = vmatprep.subr.mxu0 0.0
    %82 = vmatpush1.msra.mxu0 %v64
    %83 = vmatprep.subr.mxu0 0.0
    %84 = vmatpush1.msra.mxu0 %v65
    %85 = vmatprep.subr.mxu0 0.0
    %86 = vmatpush1.msra.mxu0 %v66
    %87 = vmatprep.subr.mxu0 0.0
    %88 = vmatpush1.msra.mxu0 0.0
    %89 = vmatprep.subr.mxu0 0.0
    %90 = vmatpush1.msra.mxu0 0.0
    %91 = vmatprep.subr.mxu0 0.0
    %92 = vmatpush1.msra.mxu0 0.0
    %93 = vmatprep.subr.mxu0 0.0
    %94 = vmatpush1.msra.mxu0 0.0
    %95 = vmatprep.subr.mxu0 0.0
    %96 = vmatpush1.msra.mxu0 0.0
    %97 = vmatprep.subr.mxu0 0.0
    %98 = vmatpush1.msra.mxu0 0.0
    %99 = vmatprep.subr.mxu0 0.0
    %100 = vmatpush1.msra.mxu0 0.0
    %101 = vmatprep.subr.mxu0 0.0
    %102 = vmatpush1.msra.mxu0 0.0
    %103 = vmatprep.subr.mxu0 0.0
    %104 = vmatpush1.msra.mxu0 0.0
    %105 = vmatprep.subr.mxu0 0.0
    %106 = vmatpush1.msra.mxu0 0.0
    %107 = vmatprep.subr.mxu0 0.0
    %108 = vmatpush1.msra.mxu0 0.0
    %109 = vmatprep.subr.mxu0 0.0
    %110 = vmatpush1.msra.mxu0 0.0
    %111 = vmatprep.subr.mxu0 0.0
    %112 = vmatpush1.msra.mxu0 0.0
    %113 = vmatprep.subr.mxu0 0.0
    %114 = vmatpush1.msra.mxu0 0.0
    %115 = vmatprep.subr.mxu0 0.0
    %116 = vmatpush1.msra.mxu0 0.0
    %117 = vmatprep.subr.mxu0 0.0
    %118 = vmatpush1.msra.mxu0 0.0
    %119 = vmatprep.subr.mxu0 0.0
    %120 = vmatpush1.msra.mxu0 0.0
    %121 = vmatprep.subr.mxu0 0.0
    %122 = vmatpush1.msra.mxu0 0.0
    %123 = vmatprep.subr.mxu0 0.0
    %124 = vmatpush1.msra.mxu0 0.0
    %125 = vmatprep.subr.mxu0 0.0
    %126 = vmatpush1.msra.mxu0 0.0
    %127 = vmatprep.subr.mxu0 0.0
    %128 = vmatpush1.msra.mxu0 0.0
    %129 = vmatprep.subr.mxu0 0.0
    %130 = vmatpush1.msra.mxu0 0.0
    %131 = vmatprep.subr.mxu0 0.0
    %132 = vmatpush1.msra.mxu0 0.0
    %133 = vmatprep.subr.mxu0 0.0
    %134 = vmatpush1.msra.mxu0 0.0
    %135 = vmatprep.mubr.f32.mxu0 0.0
    %136 = vmatmul.mubr.f32.gmra.mrb[0].mxu0 %v69
    %v137 = vpop.f32.mrb[0].mxu0
    %v138 = vadd.f32 0.0, %v137
    %v139 = vpop.f32.mrb[0].mxu0
    %140 = vdwg.mxu0
    %v141 = vmul.f32 %v138, %v138
    %143 = vrot.lane.b32.xlu0 %v141, 96
    %v144 = vpop.permute.xlu0 %143
    %v146 = vadd.f32 %v141, %v144
    %v147 = vrsqrt.pop %v146
    %s148 = sld [smem:[#allocation2]]
    %v149 = vstv %s148
    %v150 = vmul.f32 %v149, %v147
    %v151 = vsub.f32 1.0, %v150
    %v152 = vmax.f32 %v151, 0.0
    %v153 = vmul.f32 %v138, %v152
    %155 = vrot.lane.b32.xlu0 %v152, 32
    %v156 = vpop.permute.xlu0 %155
    %v158 = vmul.f32 %v138, %v156
    %vm159 = vcmask 261120
    %v160 = vsel %vm159, %v153, %v158
    %v161 = vld [vmem:[#allocation8] sm:$0xff]
    %v162 = vld [vmem:[#allocation8 + $0x8] sm:$0xff]
    %v163 = vld [vmem:[#allocation8 + $0x10] sm:$0xff]
    %v164 = vld [vmem:[#allocation8 + $0x18] sm:$0xff]
    %v165 = vld [vmem:[#allocation8 + $0x20] sm:$0xff]
    %v166 = vld [vmem:[#allocation8 + $0x28] sm:$0xff]
    %v167 = vld [vmem:[#allocation8 + $0x30] sm:$0xff]
    %v168 = vld [vmem:[#allocation8 + $0x38] sm:$0xff]
    %v170 = vsel %vm67, %v160, 0
    %172 = vmatprep.subr.mxu0 0.0
    %173 = vmatpush1.msra.mxu0 %v161
    %174 = vmatprep.subr.mxu0 0.0
    %175 = vmatpush1.msra.mxu0 %v162
    %176 = vmatprep.subr.mxu0 0.0
    %177 = vmatpush1.msra.mxu0 %v163
    %178 = vmatprep.subr.mxu0 0.0
    %179 = vmatpush1.msra.mxu0 %v164
    %180 = vmatprep.subr.mxu0 0.0
    %181 = vmatpush1.msra.mxu0 %v165
    %182 = vmatprep.subr.mxu0 0.0
    %183 = vmatpush1.msra.mxu0 %v166
    %184 = vmatprep.subr.mxu0 0.0
    %185 = vmatpush1.msra.mxu0 %v167
    %186 = vmatprep.subr.mxu0 0.0
    %187 = vmatpush1.msra.mxu0 %v168
    %188 = vmatprep.subr.mxu0 0.0
    %189 = vmatpush1.msra.mxu0 0.0
    %190 = vmatprep.subr.mxu0 0.0
    %191 = vmatpush1.msra.mxu0 0.0
    %192 = vmatprep.subr.mxu0 0.0
    %193 = vmatpush1.msra.mxu0 0.0
    %194 = vmatprep.subr.mxu0 0.0
    %195 = vmatpush1.msra.mxu0 0.0
    %196 = vmatprep.subr.mxu0 0.0
    %197 = vmatpush1.msra.mxu0 0.0
    %198 = vmatprep.subr.mxu0 0.0
    %199 = vmatpush1.msra.mxu0 0.0
    %200 = vmatprep.subr.mxu0 0.0
    %201 = vmatpush1.msra.mxu0 0.0
    %202 = vmatprep.subr.mxu0 0.0
    %203 = vmatpush1.msra.mxu0 0.0
    %204 = vmatprep.subr.mxu0 0.0
    %205 = vmatpush1.msra.mxu0 0.0
    %206 = vmatprep.subr.mxu0 0.0
    %207 = vmatpush1.msra.mxu0 0.0
    %208 = vmatprep.subr.mxu0 0.0
    %209 = vmatpush1.msra.mxu0 0.0
    %210 = vmatprep.subr.mxu0 0.0
    %211 = vmatpush1.msra.mxu0 0.0
    %212 = vmatprep.subr.mxu0 0.0
    %213 = vmatpush1.msra.mxu0 0.0
    %214 = vmatprep.subr.mxu0 0.0
    %215 = vmatpush1.msra.mxu0 0.0
    %216 = vmatprep.subr.mxu0 0.0
    %217 = vmatpush1.msra.mxu0 0.0
    %218 = vmatprep.subr.mxu0 0.0
    %219 = vmatpush1.msra.mxu0 0.0
    %220 = vmatprep.subr.mxu0 0.0
    %221 = vmatpush1.msra.mxu0 0.0
    %222 = vmatprep.subr.mxu0 0.0
    %223 = vmatpush1.msra.mxu0 0.0
    %224 = vmatprep.subr.mxu0 0.0
    %225 = vmatpush1.msra.mxu0 0.0
    %226 = vmatprep.subr.mxu0 0.0
    %227 = vmatpush1.msra.mxu0 0.0
    %228 = vmatprep.subr.mxu0 0.0
    %229 = vmatpush1.msra.mxu0 0.0
    %230 = vmatprep.subr.mxu0 0.0
    %231 = vmatpush1.msra.mxu0 0.0
    %232 = vmatprep.subr.mxu0 0.0
    %233 = vmatpush1.msra.mxu0 0.0
    %234 = vmatprep.subr.mxu0 0.0
    %235 = vmatpush1.msra.mxu0 0.0
    %236 = vmatprep.mubr.f32.mxu0 0.0
    %237 = vmatmul.mubr.f32.gmra.mrb[0].mxu0 %v170
    %v238 = vpop.f32.mrb[0].mxu0
    %v239 = vadd.f32 0.0, %v238
    %v240 = vpop.f32.mrb[0].mxu0
    %241 = vdwg.mxu0
    %242 = vst.msk [vmem:[#allocation9] sm:$0xff] %vm67, %v239
    // Predicated region
    $region30: #{tpu_custom_call.1} parent=1 // pred_check
      _
    $region31: #{tpu_custom_call.1} parent=1 // pred_check_branch
      %244 = sbr.rel (0) target = $region33
    $region32: #{tpu_custom_call.1} parent=1 // pred_region
      %s246 = ssub.s32 128, 128
      %247 = vsyncadd [#allocation5], %s246
      %s249 = sshll.u32 [#allocation9], 4
      %s250 = int_to_ptr.vmem [resolvable:$true] %s249
      %252 = dma.vmem_to_hbm [thread:$0]  %s250, 128, %s4, [#allocation5]
    $region33: #{tpu_custom_call.1} parent=1 // pred_fallthru
      _
    // Predicated region
    $region34: #{tpu_custom_call.1} parent=1 // pred_check
      _
    $region35: #{tpu_custom_call.1} parent=1 // pred_check_branch
      %254 = sbr.rel (0) target = $region37
    $region36: #{tpu_custom_call.1} parent=1 // pred_region
      %255 = dma.done [#allocation5], 128
    $region37: #{tpu_custom_call.1} parent=1 // pred_fallthru
      _
    %256 = vsyncpa [#allocation4], 1
    %257 = vsyncpa [#allocation7], 1
    %258 = vsyncpa [#allocation5], 1

</llo_original>
